<compile_context>
chip_gen: v6e
topology: v6e:2x2x1
jax: 0.10.0
libtpu: 0.0.40
codegen_flags: <defaults>
</compile_context>

<pallas_src>
import jax
import jax.numpy as jnp
from jax.experimental import pallas as pl
from jax.experimental.pallas import tpu as pltpu


def _mish_kernel(x_ref, o_ref):
    x = x_ref[...].astype(jnp.float32)
    # mish(x) = x * tanh(softplus(x)) = x * ((1+e^x)^2 - 1) / ((1+e^x)^2 + 1)
    #         = x * w / (w + 2)   with   w = u*(u+2),  u = e^x
    # Clamp the exp argument: for x > 20, w/(w+2) is already 1.0 in f32, and
    # without the clamp x > ~44 would give inf*0 = NaN below.
    u = jnp.exp(jnp.minimum(x, 20.0))
    w = u * (u + 2.0)
    d = w + 2.0
    inv = pl.reciprocal(d, approx=True)      # EUP vrcp (cheap single issue)
    inv = inv * (2.0 - d * inv)              # one Newton step on the VPU -> ~f32 accuracy
    o_ref[...] = (x * w * inv).astype(o_ref.dtype)


def _mish_ref(x):
    """Plain-JAX fallback for tiny (<128-element) inputs."""
    xf = x.astype(jnp.float32)
    return (xf * jnp.tanh(jax.nn.softplus(xf))).astype(x.dtype)


# Per-buffer block budget in BYTES (dtype-independent): 8 MiB -> 2M f32 or
# 4M bf16 elements per block.  With in+out double-buffered that is ~32 MiB,
# under the 40 MiB VMEM limit below (fits v7x's 64 MiB VMEM with headroom).
_BLOCK_BYTES = 8 * 1024 * 1024
_VMEM_LIMIT_BYTES = 40 * 1024 * 1024


def _dim_semantics(grid_size):
    """Shard the streaming grid across both TensorCores on v7x."""
    kind = ""
    try:
        kind = jax.devices()[0].device_kind.lower()
    except Exception:
        pass
    if grid_size >= 2 and ("v7" in kind or "7x" in kind):
        return (pltpu.CORE_PARALLEL,)
    # v5e/v6e have a single TC; "parallel" is a measured no-op but harmless.
    return ("parallel",)


def _mish_pallas_2d(x2d):
    rows, lane_w = x2d.shape
    elem_bytes = jnp.dtype(x2d.dtype).itemsize

    # Block rows: either the full row extent (single/partial step), or a large
    # multiple of 32 (divisible by 8, packed-dtype friendly) sized so one
    # block is ~_BLOCK_BYTES.
    budget_rows = max(1, _BLOCK_BYTES // (elem_bytes * lane_w))
    budget_rows = max(32, (budget_rows // 32) * 32)
    block_rows = min(rows, budget_rows)
    grid_size = pl.cdiv(rows, block_rows)

    return pl.pallas_call(
        _mish_kernel,
        out_shape=jax.ShapeDtypeStruct((rows, lane_w), x2d.dtype),
        grid_spec=pltpu.PrefetchScalarGridSpec(
            num_scalar_prefetch=0,
            grid=(grid_size,),
            in_specs=[pl.BlockSpec((block_rows, lane_w), lambda i: (i, 0))],
            out_specs=pl.BlockSpec((block_rows, lane_w), lambda i: (i, 0)),
        ),
        compiler_params=pltpu.CompilerParams(
            dimension_semantics=_dim_semantics(grid_size),
            vmem_limit_bytes=_VMEM_LIMIT_BYTES,
        ),
    )(x2d)


def mish(x):
    """Mish activation via a Pallas TPU kernel. Accepts any shape."""
    orig_shape = x.shape
    total = x.size
    if total == 0:
        return x
    x_flat = x.reshape(-1)

    LANES = 128
    if total < LANES:
        # too small for a useful kernel launch
        return _mish_ref(x_flat).reshape(orig_shape)

    if total % LANES != 0:
        # Rare ragged case: pad only the <128-element tail with zeros
        # (mish(0) == 0, no NaNs) so the whole tensor streams through the
        # kernel, then slice the result back to the original size.
        pad = (-total) % LANES
        x_flat = jnp.pad(x_flat, (0, pad))
        padded = total + pad
    else:
        padded = total

    # Widest lane width (multiple of 128) dividing the padded size, so output
    # stores are lane-dense and unmasked.
    lane_w = LANES
    for lw in (1024, 512, 256):
        if padded % lw == 0:
            lane_w = lw
            break

    out_flat = _mish_pallas_2d(x_flat.reshape(padded // lane_w, lane_w)).reshape(-1)
    if padded != total:
        out_flat = out_flat[:total]
    return out_flat.reshape(orig_shape)


if __name__ == "__main__":
    key = jax.random.PRNGKey(0)
    # NCHW input, small shape
    x = jax.random.normal(key, (2, 4, 16, 16), dtype=jnp.float32) * 3.0

    y = mish(x)
    jax.block_until_ready(y)

    # reference check in plain JAX
    ref = x * jnp.tanh(jax.nn.softplus(x))
    assert y.shape == x.shape and y.dtype == x.dtype
    assert jnp.allclose(y, ref, atol=1e-5, rtol=1e-5)

    # extra range check (large positive / large negative / zero)
    xe = jnp.array([-100.0, -30.0, -8.0, 0.0, 8.0, 30.0, 100.0], dtype=jnp.float32)
    ye = mish(jnp.tile(xe, 128 // xe.size * 20))  # replicate to a kernel-sized vector
    refe = jnp.tile(xe, 128 // xe.size * 20)
    refe = refe * jnp.tanh(jax.nn.softplus(refe))
    assert bool(jnp.all(jnp.isfinite(ye)))
    assert jnp.allclose(ye, refe, atol=1e-5, rtol=1e-5)

    print("KERNEL_OK")
</pallas_src>

<mosaic_0001>
module attributes {stable_mosaic.version = 11 : i64} {
  func.func @_mish_kernel(%arg0: i32, %arg1: memref<2x1024xf32, #tpu.memory_space<vmem>>, %arg2: memref<2x1024xf32, #tpu.memory_space<vmem>>) attributes {dimension_semantics = [#tpu.dimension_semantics<parallel>], iteration_bounds = array<i64: 1>, scalar_prefetch = 0 : i64, scratch_operands = 0 : i64, tpu.core_type = #tpu.core_type<tc>, window_params = [{transform_indices = @transform_0, window_bounds = array<i64: 2, 1024>}, {transform_indices = @transform_1, window_bounds = array<i64: 2, 1024>}]} {
    %c0 = arith.constant 0 : index
    %c0_0 = arith.constant 0 : index
    %0 = vector.load %arg1[%c0, %c0_0] : memref<2x1024xf32, #tpu.memory_space<vmem>>, vector<2x1024xf32>
    %cst = arith.constant 2.000000e+01 : f32
    %1 = vector.broadcast %cst : f32 to vector<2x1024xf32>
    %2 = arith.minimumf %0, %1 : vector<2x1024xf32>
    %3 = math.exp %2 : vector<2x1024xf32>
    %cst_1 = arith.constant 2.000000e+00 : f32
    %4 = vector.broadcast %cst_1 : f32 to vector<2x1024xf32>
    %5 = arith.addf %3, %4 : vector<2x1024xf32>
    %6 = arith.mulf %3, %5 : vector<2x1024xf32>
    %cst_2 = arith.constant 2.000000e+00 : f32
    %7 = vector.broadcast %cst_2 : f32 to vector<2x1024xf32>
    %8 = arith.addf %6, %7 : vector<2x1024xf32>
    %9 = tpu.reciprocal %8 {approx = true} : vector<2x1024xf32> -> vector<2x1024xf32>
    %10 = arith.mulf %8, %9 : vector<2x1024xf32>
    %cst_3 = arith.constant 2.000000e+00 : f32
    %11 = vector.broadcast %cst_3 : f32 to vector<2x1024xf32>
    %12 = arith.subf %11, %10 : vector<2x1024xf32>
    %13 = arith.mulf %9, %12 : vector<2x1024xf32>
    %14 = arith.mulf %0, %6 : vector<2x1024xf32>
    %15 = arith.mulf %14, %13 : vector<2x1024xf32>
    %c0_4 = arith.constant 0 : index
    %c0_5 = arith.constant 0 : index
    %16 = vector.load %arg2[%c0_4, %c0_5] : memref<2x1024xf32, #tpu.memory_space<vmem>>, vector<2x1024xf32>
    tpu.vector_store %arg2[%c0_4, %c0_5], %15 {strides = array<i32>} : memref<2x1024xf32, #tpu.memory_space<vmem>>, vector<2x1024xf32>,
    return
  }
  func.func @transform_0(%arg0: i32) -> (i32, i32) {
    %c0_i32 = arith.constant 0 : i32
    %c0_i32_0 = arith.constant 0 : i32
    return %arg0, %c0_i32 : i32, i32
  }
  func.func @transform_1(%arg0: i32) -> (i32, i32) {
    %c0_i32 = arith.constant 0 : i32
    %c0_i32_0 = arith.constant 0 : i32
    return %arg0, %c0_i32 : i32, i32
  }
}

</mosaic_0001>

<llo_original>
// kernel: tpu_custom_call.1
$region0: #{tpu_custom_call.1}
  #allocation0 [shape = 'u32[]', space=smem, size = 0x4, offset = 0x4, fixed_abs, tag = 'smem constant byte address 0x4 - core index']
  #allocation1 [shape = 'u32[144,128]{1,0:T(1,128)}', space=vmem, size = 0x12000, scoped, tag = 'internal scratch']
  %s0 = inlined_call_operand.hbm [shape: f32[2,1024], index: 0, kind: input, shape index: {}]
  %s1 = inlined_call_operand.hbm [shape: f32[2,1024], index: 1, kind: output, shape index: {}]
  %s2 = sld [smem:[#allocation0]]
  $region18: #{tpu_custom_call.1} parent=0
    _
  %s4 = ssub.s32 1, %s2
  %s5 = scalar_select 0, %s4, %s2
  $region1: #{tpu_custom_call.1} parent=0
    #allocation2 [shape = 'u8[8192]{0}', space=vmem, size = 0x2000, scoped, tag = 'input window, operand 0, single buffered']
    #allocation3 [shape = 's32[1]{0}', space=sflag, size = 0x4, scoped, tag = 'scoped memory for tpu_custom_call.1']
    #allocation4 [shape = 's32[1]{0}', space=sflag, size = 0x4, scoped, tag = 'scoped memory for tpu_custom_call.1']
    #allocation5 [shape = 'u8[8192]{0}', space=vmem, size = 0x2000, scoped, tag = 'output window, operand 0, single buffered']
    %6 = vsyncpa [#allocation3], 0
    %7 = vsyncpa [#allocation4], 0
    // Predicated region
    $region2: #{tpu_custom_call.1} parent=1 // pred_check
      _
    $region3: #{tpu_custom_call.1} parent=1 // pred_check_branch
      %9 = sbr.rel (0) target = $region5
    $region4: #{tpu_custom_call.1} parent=1 // pred_region
      %s11 = ssub.s32 256, 256
      %12 = vsyncadd [#allocation3], %s11
      %s14 = sshll.u32 [#allocation2], 4
      %s15 = int_to_ptr.vmem [resolvable:$true] %s14
      %17 = dma.hbm_to_vmem [thread:$0]  %s0, 256, %s15, [#allocation3]
    $region5: #{tpu_custom_call.1} parent=1 // pred_fallthru
      _
    // Predicated region
    $region6: #{tpu_custom_call.1} parent=1 // pred_check
      _
    $region7: #{tpu_custom_call.1} parent=1 // pred_check_branch
      %19 = sbr.rel (0) target = $region9
    $region8: #{tpu_custom_call.1} parent=1 // pred_region
      %20 = dma.done [#allocation3], 256
    $region9: #{tpu_custom_call.1} parent=1 // pred_fallthru
      _
    %v21 = vld [vmem:[#allocation2] sm:$0xff]
    %v22 = vld [vmem:[#allocation2 + $0x8] sm:$0xff]
    %v23 = vmin.f32 %v21, 20.0
    %v24 = vmin.f32 %v22, 20.0
    %v25 = vmul.f32 %v23, 1.442695
    %v26 = vpow.pop %v25
    %v27 = vmul.f32 %v24, 1.442695
    %v28 = vpow.pop %v27
    %v29 = vadd.f32 %v26, 2.0
    %v30 = vadd.f32 %v28, 2.0
    %v31 = vmul.f32 %v26, %v29
    %v32 = vmul.f32 %v28, %v30
    %v33 = vadd.f32 %v31, 2.0
    %v34 = vadd.f32 %v32, 2.0
    %v35 = vrcp.pop %v33
    %v36 = vrcp.pop %v34
    %v37 = vmul.f32 %v33, %v35
    %v38 = vmul.f32 %v34, %v36
    %v39 = vsub.f32 2.0, %v37
    %v40 = vsub.f32 2.0, %v38
    %v41 = vmul.f32 %v35, %v39
    %v42 = vmul.f32 %v36, %v40
    %v43 = vmul.f32 %v21, %v31
    %v44 = vmul.f32 %v22, %v32
    %v45 = vmul.f32 %v43, %v41
    %v46 = vmul.f32 %v44, %v42
    %47 = vst [vmem:[#allocation5] sm:$0xff] %v45
    %48 = vst [vmem:[#allocation5 + $0x8] sm:$0xff] %v46
    // Predicated region
    $region10: #{tpu_custom_call.1} parent=1 // pred_check
      _
    $region11: #{tpu_custom_call.1} parent=1 // pred_check_branch
      %50 = sbr.rel (0) target = $region13
    $region12: #{tpu_custom_call.1} parent=1 // pred_region
      %s52 = ssub.s32 256, 256
      %53 = vsyncadd [#allocation4], %s52
      %s55 = sshll.u32 [#allocation5], 4
      %s56 = int_to_ptr.vmem [resolvable:$true] %s55
      %58 = dma.vmem_to_hbm [thread:$0]  %s56, 256, %s1, [#allocation4]
    $region13: #{tpu_custom_call.1} parent=1 // pred_fallthru
      _
    // Predicated region
    $region14: #{tpu_custom_call.1} parent=1 // pred_check
      _
    $region15: #{tpu_custom_call.1} parent=1 // pred_check_branch
      %60 = sbr.rel (0) target = $region17
    $region16: #{tpu_custom_call.1} parent=1 // pred_region
      %61 = dma.done [#allocation4], 256
    $region17: #{tpu_custom_call.1} parent=1 // pred_fallthru
      _
    %62 = vsyncpa [#allocation3], 1
    %63 = vsyncpa [#allocation4], 1

</llo_original>
